<compile_context>
chip_gen: v7x
topology: tpu7x:2x2x1
jax: 0.10.0
libtpu: 0.0.40
codegen_flags: <defaults>
</compile_context>

<pallas_src>
import jax
import jax.numpy as jnp
from jax.experimental import pallas as pl
from jax.experimental.pallas import tpu as pltpu

EPS = 1e-5
LANE = 128
SUBLANE = 8


def _cdiv(a, b):
    return -(-a // b)


def _round_up(n, m):
    return _cdiv(n, m) * m


def classifier_kernel(x_ref, w1_ref, b1_ref, w2_ref, b2_ref, out_ref):
    # Dropout (eval mode) == identity; BatchNorm already folded into w1/b1.
    x = x_ref[...]                                      # [TM, Cin]

    # layer1: folded Linear + BN + ReLU (f32 accumulation on the MXU).
    h = jnp.dot(x, w1_ref[...], preferred_element_type=jnp.float32) + b1_ref[...]
    h = jnp.maximum(h, 0.0)                             # [TM, Cmid_p] (pad cols 0)

    # layer2: Linear.  Output kept at the true Ncls width (masked store is
    # hidden under DMA in this HBM-bound regime; no further N/K padding —
    # MXU underfill is accepted).
    h = h.astype(w2_ref.dtype)
    out = jnp.dot(h, w2_ref[...], preferred_element_type=jnp.float32) + b2_ref[...]
    out_ref[...] = out.astype(out_ref.dtype)


def fold_and_pack_params(params, dtype=jnp.bfloat16):
    """Fold BatchNorm (eval) into Linear1 and lane-pad only the hidden dim.

    Call once; the packed params are reused for every forward call.  `dtype`
    controls the MXU operand dtype (bf16 halves weight/activation HBM traffic;
    accumulation stays f32).
    """
    w1, b1 = params["w1"], params["b1"]               # [Cin, Cmid], [Cmid]
    w2, b2 = params["w2"], params["b2"]               # [Cmid, Ncls], [Ncls]
    gamma, beta = params["gamma"], params["beta"]
    rmean, rvar = params["running_mean"], params["running_var"]

    # BN (eval) fold: y = ((x@W1 + b1) - mean) * gamma/sqrt(var+eps) + beta
    s = gamma * jax.lax.rsqrt(rvar + EPS)             # [Cmid]
    w1f = w1 * s[None, :]
    b1f = (b1 - rmean) * s + beta

    cin, cmid = w1.shape
    ncls = w2.shape[1]
    cmid_p = _round_up(cmid, LANE)                    # lane-pad hidden dim only

    w1p = jnp.zeros((cin, cmid_p), dtype).at[:, :cmid].set(w1f.astype(dtype))
    w2p = jnp.zeros((cmid_p, ncls), dtype).at[:cmid, :].set(w2.astype(dtype))
    b1p = jnp.zeros((1, cmid_p), jnp.float32).at[0, :cmid].set(
        b1f.astype(jnp.float32))
    b2p = b2.astype(jnp.float32).reshape(1, ncls)

    return {"w1": w1p, "b1": b1p, "w2": w2p, "b2": b2p,
            "cin": cin, "cmid_p": cmid_p, "ncls": ncls}


def _choose_tm(batch, tile_m, dtype, min_steps=2):
    """Batch tile: sublane-aligned, <= tile_m, >= min_steps grid steps if possible."""
    itemsize = jnp.dtype(dtype).itemsize
    align = SUBLANE * max(1, 4 // itemsize)           # 8 for f32, 16 for bf16
    steps = max(min_steps, _cdiv(batch, tile_m))      # >=2 steps -> v7x megacore
    tm = _round_up(_cdiv(batch, steps), align)
    tm = min(tm, _round_up(batch, SUBLANE))           # never exceed (8-aligned) batch
    return max(tm, SUBLANE)


def classifier_forward(x, folded, *, tile_m=512):
    """x: [B, Cin].  folded: output of fold_and_pack_params."""
    B, cin = x.shape
    assert cin == folded["cin"]
    cmid_p, ncls = folded["cmid_p"], folded["ncls"]
    w1, b1, w2, b2 = folded["w1"], folded["b1"], folded["w2"], folded["b2"]

    if x.dtype != w1.dtype:          # prefer producing x upstream in this dtype
        x = x.astype(w1.dtype)

    TM = _choose_tm(B, tile_m, x.dtype)
    grid = (pl.cdiv(B, TM),)         # ragged last block handled by Pallas

    # VMEM budget: single-buffered resident weights + double-buffered x/out tiles.
    weight_bytes = w1.nbytes + w2.nbytes + b1.nbytes + b2.nbytes
    tile_bytes = 2 * TM * cin * x.dtype.itemsize + 2 * TM * ncls * 4
    vmem_limit = int(min(64 << 20,
                         max(32 << 20, weight_bytes + tile_bytes + (4 << 20))))
    # TODO(synk): if folded weights exceed ~half of v7x's 64 MiB VMEM, add a
    # Cmid/Cin grid axis ("arbitrary") with a VMEM f32 accumulator instead of
    # keeping both weight matrices fully resident.

    cost = pl.CostEstimate(
        flops=int(2 * B * (cin * cmid_p + cmid_p * ncls)),
        transcendentals=0,
        bytes_accessed=int(x.nbytes + weight_bytes + B * ncls * 4),
    )

    resident = dict(pipeline_mode=pl.Buffered(1))     # constant index -> 1 buffer

    out = pl.pallas_call(
        classifier_kernel,
        out_shape=jax.ShapeDtypeStruct((B, ncls), jnp.float32),
        grid=grid,
        in_specs=[
            pl.BlockSpec((TM, cin), lambda i: (i, 0)),              # x: batch-tiled
            pl.BlockSpec(w1.shape, lambda i: (0, 0), **resident),   # weights resident
            pl.BlockSpec(b1.shape, lambda i: (0, 0), **resident),
            pl.BlockSpec(w2.shape, lambda i: (0, 0), **resident),
            pl.BlockSpec(b2.shape, lambda i: (0, 0), **resident),
        ],
        out_specs=pl.BlockSpec((TM, ncls), lambda i: (i, 0)),       # unpadded store
        compiler_params=pltpu.CompilerParams(
            dimension_semantics=("parallel",),
            vmem_limit_bytes=vmem_limit),
        cost_estimate=cost,
    )(x, w1, b1, w2, b2)

    return out


def init_params(key, in_channel, mid_channel, n_class):
    """Deterministic kaiming-style init (normal, std = sqrt(2 / fan_in))."""
    k1, k2 = jax.random.split(key, 2)
    w1 = jax.random.normal(k1, (in_channel, mid_channel), jnp.float32) * jnp.sqrt(
        2.0 / in_channel)
    w2 = jax.random.normal(k2, (mid_channel, n_class), jnp.float32) * jnp.sqrt(
        2.0 / mid_channel)
    return {
        "w1": w1,                                                  # stored [in, out]
        "b1": jnp.zeros((mid_channel,), jnp.float32),
        "gamma": jnp.ones((mid_channel,), jnp.float32),
        "beta": jnp.zeros((mid_channel,), jnp.float32),
        "running_mean": jnp.zeros((mid_channel,), jnp.float32),
        "running_var": jnp.ones((mid_channel,), jnp.float32),
        "w2": w2,                                                  # stored [in, out]
        "b2": jnp.zeros((n_class,), jnp.float32),
    }


def _reference(x, params):
    """Pure-JAX eval-mode reference (un-folded math)."""
    h = x @ params["w1"] + params["b1"]
    h = (h - params["running_mean"]) * (
        params["gamma"] / jnp.sqrt(params["running_var"] + EPS)) + params["beta"]
    h = jnp.maximum(h, 0.0)
    return h @ params["w2"] + params["b2"]


if __name__ == "__main__":
    B, in_channel, mid_channel, n_class = 8, 32, 64, 16

    key = jax.random.PRNGKey(0)
    kx, kp, kx2 = jax.random.split(key, 3)
    x = jax.random.normal(kx, (B, in_channel), jnp.float32)
    params = init_params(kp, in_channel, mid_channel, n_class)
    ref = _reference(x, params)

    # f32 path: matches the PyTorch eval-mode math tightly.
    folded_f32 = fold_and_pack_params(params, dtype=jnp.float32)
    out_f32 = jax.block_until_ready(classifier_forward(x, folded_f32))
    assert out_f32.shape == (B, n_class)
    assert jnp.allclose(out_f32, ref, atol=1e-4, rtol=1e-4), float(
        jnp.max(jnp.abs(out_f32 - ref)))

    # bf16 path (perf default): relaxed tolerance for bf16 operand rounding.
    folded_bf16 = fold_and_pack_params(params, dtype=jnp.bfloat16)
    out_bf16 = jax.block_until_ready(
        classifier_forward(x.astype(jnp.bfloat16), folded_bf16))
    assert out_bf16.shape == (B, n_class)
    assert jnp.allclose(out_bf16, ref, atol=5e-2, rtol=5e-2), float(
        jnp.max(jnp.abs(out_bf16 - ref)))

    # Ragged batch (B not a multiple of TM): exercises the no-host-padding path
    # where Pallas masks the last block's OOB rows.
    B2 = 20
    x2 = jax.random.normal(kx2, (B2, in_channel), jnp.float32)
    ref2 = _reference(x2, params)
    out2 = jax.block_until_ready(
        classifier_forward(x2.astype(jnp.bfloat16), folded_bf16, tile_m=16))
    assert out2.shape == (B2, n_class)
    assert jnp.allclose(out2, ref2, atol=5e-2, rtol=5e-2), float(
        jnp.max(jnp.abs(out2 - ref2)))

    print("KERNEL_OK")
</pallas_src>

<mosaic_0001>
module attributes {stable_mosaic.version = 11 : i64} {
  func.func @classifier_kernel(%arg0: i32, %arg1: memref<8x32xf32, #tpu.memory_space<vmem>>, %arg2: memref<32x128xf32, #tpu.memory_space<vmem>>, %arg3: memref<1x128xf32, #tpu.memory_space<vmem>>, %arg4: memref<128x16xf32, #tpu.memory_space<vmem>>, %arg5: memref<1x16xf32, #tpu.memory_space<vmem>>, %arg6: memref<8x16xf32, #tpu.memory_space<vmem>>) attributes {dimension_semantics = [#tpu.dimension_semantics<parallel>], iteration_bounds = array<i64: 1>, scalar_prefetch = 0 : i64, scratch_operands = 0 : i64, tpu.core_type = #tpu.core_type<tc>, window_params = [{transform_indices = @transform_0, window_bounds = array<i64: 8, 32>}, {pipeline_mode = #tpu.pipeline_mode<synchronous>, transform_indices = @transform_1, window_bounds = array<i64: 32, 128>}, {pipeline_mode = #tpu.pipeline_mode<synchronous>, transform_indices = @transform_2, window_bounds = array<i64: 1, 128>}, {pipeline_mode = #tpu.pipeline_mode<synchronous>, transform_indices = @transform_3, window_bounds = array<i64: 128, 16>}, {pipeline_mode = #tpu.pipeline_mode<synchronous>, transform_indices = @transform_4, window_bounds = array<i64: 1, 16>}, {transform_indices = @transform_5, window_bounds = array<i64: 8, 16>}]} {
    %c0 = arith.constant 0 : index
    %c0_0 = arith.constant 0 : index
    %0 = vector.load %arg1[%c0, %c0_0] : memref<8x32xf32, #tpu.memory_space<vmem>>, vector<8x32xf32>
    %c0_1 = arith.constant 0 : index
    %c0_2 = arith.constant 0 : index
    %1 = vector.load %arg2[%c0_1, %c0_2] : memref<32x128xf32, #tpu.memory_space<vmem>>, vector<32x128xf32>
    %cst = arith.constant dense<0.000000e+00> : vector<8x128xf32>
    %2 = tpu.matmul %0, %1, %cst {dimension_numbers = #tpu.dot_dimension_numbers<[1], [0], [0], [1], [0, 0, 1, 1], [], []>} : vector<8x32xf32>, vector<32x128xf32>, vector<8x128xf32> -> vector<8x128xf32>
    %c0_3 = arith.constant 0 : index
    %c0_4 = arith.constant 0 : index
    %3 = vector.load %arg3[%c0_3, %c0_4] : memref<1x128xf32, #tpu.memory_space<vmem>>, vector<1x128xf32>
    %4 = vector.broadcast %3 : vector<1x128xf32> to vector<8x128xf32>
    %5 = arith.addf %2, %4 : vector<8x128xf32>
    %cst_5 = arith.constant 0.000000e+00 : f32
    %6 = vector.broadcast %cst_5 : f32 to vector<8x128xf32>
    %7 = arith.maximumf %5, %6 : vector<8x128xf32>
    %c0_6 = arith.constant 0 : index
    %c0_7 = arith.constant 0 : index
    %8 = vector.load %arg4[%c0_6, %c0_7] : memref<128x16xf32, #tpu.memory_space<vmem>>, vector<128x16xf32>
    %cst_8 = arith.constant dense<0.000000e+00> : vector<8x16xf32>
    %9 = tpu.matmul %7, %8, %cst_8 {dimension_numbers = #tpu.dot_dimension_numbers<[1], [0], [0], [1], [0, 0, 1, 1], [], []>} : vector<8x128xf32>, vector<128x16xf32>, vector<8x16xf32> -> vector<8x16xf32>
    %c0_9 = arith.constant 0 : index
    %c0_10 = arith.constant 0 : index
    %10 = vector.load %arg5[%c0_9, %c0_10] : memref<1x16xf32, #tpu.memory_space<vmem>>, vector<1x16xf32>
    %11 = vector.broadcast %10 : vector<1x16xf32> to vector<8x16xf32>
    %12 = arith.addf %9, %11 : vector<8x16xf32>
    %c0_11 = arith.constant 0 : index
    %c0_12 = arith.constant 0 : index
    %13 = vector.load %arg6[%c0_11, %c0_12] : memref<8x16xf32, #tpu.memory_space<vmem>>, vector<8x16xf32>
    tpu.vector_store %arg6[%c0_11, %c0_12], %12 {strides = array<i32>} : memref<8x16xf32, #tpu.memory_space<vmem>>, vector<8x16xf32>,
    return
  }
  func.func @transform_0(%arg0: i32) -> (i32, i32) {
    %c0_i32 = arith.constant 0 : i32
    %c0_i32_0 = arith.constant 0 : i32
    return %arg0, %c0_i32 : i32, i32
  }
  func.func @transform_1(%arg0: i32) -> (i32, i32) {
    %c0_i32 = arith.constant 0 : i32
    %c0_i32_0 = arith.constant 0 : i32
    %c0_i32_1 = arith.constant 0 : i32
    return %c0_i32, %c0_i32_0 : i32, i32
  }
  func.func @transform_2(%arg0: i32) -> (i32, i32) {
    %c0_i32 = arith.constant 0 : i32
    %c0_i32_0 = arith.constant 0 : i32
    %c0_i32_1 = arith.constant 0 : i32
    return %c0_i32, %c0_i32_0 : i32, i32
  }
  func.func @transform_3(%arg0: i32) -> (i32, i32) {
    %c0_i32 = arith.constant 0 : i32
    %c0_i32_0 = arith.constant 0 : i32
    %c0_i32_1 = arith.constant 0 : i32
    return %c0_i32, %c0_i32_0 : i32, i32
  }
  func.func @transform_4(%arg0: i32) -> (i32, i32) {
    %c0_i32 = arith.constant 0 : i32
    %c0_i32_0 = arith.constant 0 : i32
    %c0_i32_1 = arith.constant 0 : i32
    return %c0_i32, %c0_i32_0 : i32, i32
  }
  func.func @transform_5(%arg0: i32) -> (i32, i32) {
    %c0_i32 = arith.constant 0 : i32
    %c0_i32_0 = arith.constant 0 : i32
    return %arg0, %c0_i32 : i32, i32
  }
}

</mosaic_0001>

<llo_original>
// kernel: tpu_custom_call.1
$region0: #{tpu_custom_call.1}
  #allocation0 [shape = 'u32[]', space=smem, size = 0x4, offset = 0x4, fixed_abs, tag = 'smem constant byte address 0x4 - core index']
  #allocation1 [shape = 'u32[144,128]{1,0:T(1,128)}', space=vmem, size = 0x12000, scoped, tag = 'internal scratch']
  %s0 = inlined_call_operand.vmem [shape: f32[8,32], index: 0, kind: input, shape index: {}]
  %s1 = inlined_call_operand.vmem [shape: f32[32,128], index: 1, kind: input, shape index: {}]
  %s2 = inlined_call_operand.vmem [shape: f32[1,128], index: 2, kind: input, shape index: {}]
  %s3 = inlined_call_operand.vmem [shape: f32[128,16], index: 3, kind: input, shape index: {}]
  %s4 = inlined_call_operand.vmem [shape: f32[1,16], index: 4, kind: input, shape index: {}]
  %s5 = inlined_call_operand.hbm [shape: f32[8,16], index: 5, kind: output, shape index: {}]
  %s6 = sld [smem:[#allocation0]]
  $region30: #{tpu_custom_call.1} parent=0
    _
  %s8 = ssub.s32 1, %s6
  %s9 = scalar_select 0, %s8, %s6
  $region1: #{tpu_custom_call.1} parent=0
    #allocation2 [shape = 'u8[4096]{0}', space=vmem, size = 0x1000, scoped, tag = 'output window, operand 0, single buffered']
    #allocation3 [shape = 's32[1]{0}', space=sflag, size = 0x4, scoped, tag = 'scoped memory for tpu_custom_call.1']
    %10 = vsyncpa [#allocation3], 0
    // Predicated region
    $region2: #{tpu_custom_call.1} parent=1 // pred_check
      _
    $region3: #{tpu_custom_call.1} parent=1 // pred_check_branch
      %12 = sbr.rel (0) target = $region5
    $region4: #{tpu_custom_call.1} parent=1 // pred_region
      _
    $region5: #{tpu_custom_call.1} parent=1 // pred_fallthru
      _
    // Predicated region
    $region6: #{tpu_custom_call.1} parent=1 // pred_check
      _
    $region7: #{tpu_custom_call.1} parent=1 // pred_check_branch
      %14 = sbr.rel (0) target = $region9
    $region8: #{tpu_custom_call.1} parent=1 // pred_region
      _
    $region9: #{tpu_custom_call.1} parent=1 // pred_fallthru
      _
    // Predicated region
    $region10: #{tpu_custom_call.1} parent=1 // pred_check
      _
    $region11: #{tpu_custom_call.1} parent=1 // pred_check_branch
      %16 = sbr.rel (0) target = $region13
    $region12: #{tpu_custom_call.1} parent=1 // pred_region
      _
    $region13: #{tpu_custom_call.1} parent=1 // pred_fallthru
      _
    // Predicated region
    $region14: #{tpu_custom_call.1} parent=1 // pred_check
      _
    $region15: #{tpu_custom_call.1} parent=1 // pred_check_branch
      %18 = sbr.rel (0) target = $region17
    $region16: #{tpu_custom_call.1} parent=1 // pred_region
      _
    $region17: #{tpu_custom_call.1} parent=1 // pred_fallthru
      _
    // Predicated region
    $region18: #{tpu_custom_call.1} parent=1 // pred_check
      _
    $region19: #{tpu_custom_call.1} parent=1 // pred_check_branch
      %20 = sbr.rel (0) target = $region21
    $region20: #{tpu_custom_call.1} parent=1 // pred_region
      _
    $region21: #{tpu_custom_call.1} parent=1 // pred_fallthru
      _
    %v21 = vld [vmem:[%s0] sm:$0xff]
    %v22 = vld [vmem:[%s1] sm:$0xff]
    %v23 = vld [vmem:[%s1 + $0x8] sm:$0xff]
    %v24 = vld [vmem:[%s1 + $0x10] sm:$0xff]
    %v25 = vld [vmem:[%s1 + $0x18] sm:$0xff]
    %v26 = vld [vmem:[%s2] sm:$0x1]
    %v28 = vlaneseq
    %v29 = vshrl.u32 %v28, 7
    %v30 = vsub.s32 0, %v29
    %v31 = vrot.slane %v26, %v30
    %vm33 = vcmask 261120
    %v35 = vsel %vm33, %v21, 0
    %37 = vmatprep.subr.mxu0 0.0
    %38 = vmatpush1.msra.mxu0 %v22
    %39 = vmatprep.subr.mxu0 0.0
    %40 = vmatpush1.msra.mxu0 %v23
    %41 = vmatprep.subr.mxu0 0.0
    %42 = vmatpush1.msra.mxu0 %v24
    %43 = vmatprep.subr.mxu0 0.0
    %44 = vmatpush1.msra.mxu0 %v25
    %45 = vmatprep.subr.mxu0 0.0
    %46 = vmatpush1.msra.mxu0 0.0
    %47 = vmatprep.subr.mxu0 0.0
    %48 = vmatpush1.msra.mxu0 0.0
    %49 = vmatprep.subr.mxu0 0.0
    %50 = vmatpush1.msra.mxu0 0.0
    %51 = vmatprep.subr.mxu0 0.0
    %52 = vmatpush1.msra.mxu0 0.0
    %53 = vmatprep.subr.mxu0 0.0
    %54 = vmatpush1.msra.mxu0 0.0
    %55 = vmatprep.subr.mxu0 0.0
    %56 = vmatpush1.msra.mxu0 0.0
    %57 = vmatprep.subr.mxu0 0.0
    %58 = vmatpush1.msra.mxu0 0.0
    %59 = vmatprep.subr.mxu0 0.0
    %60 = vmatpush1.msra.mxu0 0.0
    %61 = vmatprep.subr.mxu0 0.0
    %62 = vmatpush1.msra.mxu0 0.0
    %63 = vmatprep.subr.mxu0 0.0
    %64 = vmatpush1.msra.mxu0 0.0
    %65 = vmatprep.subr.mxu0 0.0
    %66 = vmatpush1.msra.mxu0 0.0
    %67 = vmatprep.subr.mxu0 0.0
    %68 = vmatpush1.msra.mxu0 0.0
    %69 = vmatprep.subr.mxu0 0.0
    %70 = vmatpush1.msra.mxu0 0.0
    %71 = vmatprep.subr.mxu0 0.0
    %72 = vmatpush1.msra.mxu0 0.0
    %73 = vmatprep.subr.mxu0 0.0
    %74 = vmatpush1.msra.mxu0 0.0
    %75 = vmatprep.subr.mxu0 0.0
    %76 = vmatpush1.msra.mxu0 0.0
    %77 = vmatprep.subr.mxu0 0.0
    %78 = vmatpush1.msra.mxu0 0.0
    %79 = vmatprep.subr.mxu0 0.0
    %80 = vmatpush1.msra.mxu0 0.0
    %81 = vmatprep.subr.mxu0 0.0
    %82 = vmatpush1.msra.mxu0 0.0
    %83 = vmatprep.subr.mxu0 0.0
    %84 = vmatpush1.msra.mxu0 0.0
    %85 = vmatprep.subr.mxu0 0.0
    %86 = vmatpush1.msra.mxu0 0.0
    %87 = vmatprep.subr.mxu0 0.0
    %88 = vmatpush1.msra.mxu0 0.0
    %89 = vmatprep.subr.mxu0 0.0
    %90 = vmatpush1.msra.mxu0 0.0
    %91 = vmatprep.subr.mxu0 0.0
    %92 = vmatpush1.msra.mxu0 0.0
    %93 = vmatprep.subr.mxu0 0.0
    %94 = vmatpush1.msra.mxu0 0.0
    %95 = vmatprep.subr.mxu0 0.0
    %96 = vmatpush1.msra.mxu0 0.0
    %97 = vmatprep.subr.mxu0 0.0
    %98 = vmatpush1.msra.mxu0 0.0
    %99 = vmatprep.subr.mxu0 0.0
    %100 = vmatpush1.msra.mxu0 0.0
    %101 = vmatprep.mubr.f32.mxu0 0.0
    %102 = vmatmul.mubr.f32.gmra.mrb[0].mxu0 %v35
    %v103 = vpop.f32.mrb[0].mxu0
    %v104 = vadd.f32 %v31, %v103
    %v105 = vpop.f32.mrb[0].mxu0
    %106 = vdwg.mxu0
    %v107 = vmax.f32 %v104, 0.0
    %v108 = vld [vmem:[%s3] sm:$0xff]
    %v109 = vld [vmem:[%s3 + $0x8] sm:$0xff]
    %v110 = vld [vmem:[%s3 + $0x10] sm:$0xff]
    %v111 = vld [vmem:[%s3 + $0x18] sm:$0xff]
    %v112 = vld [vmem:[%s3 + $0x20] sm:$0xff]
    %v113 = vld [vmem:[%s3 + $0x28] sm:$0xff]
    %v114 = vld [vmem:[%s3 + $0x30] sm:$0xff]
    %v115 = vld [vmem:[%s3 + $0x38] sm:$0xff]
    %v116 = vld [vmem:[%s3 + $0x40] sm:$0xff]
    %v117 = vld [vmem:[%s3 + $0x48] sm:$0xff]
    %v118 = vld [vmem:[%s3 + $0x50] sm:$0xff]
    %v119 = vld [vmem:[%s3 + $0x58] sm:$0xff]
    %v120 = vld [vmem:[%s3 + $0x60] sm:$0xff]
    %v121 = vld [vmem:[%s3 + $0x68] sm:$0xff]
    %v122 = vld [vmem:[%s3 + $0x70] sm:$0xff]
    %v123 = vld [vmem:[%s3 + $0x78] sm:$0xff]
    %v124 = vld [vmem:[%s4] sm:$0x1]
    %v126 = vlaneseq
    %v127 = vshrl.u32 %v126, 7
    %v128 = vsub.s32 0, %v127
    %v129 = vrot.slane %v124, %v128
    %131 = vmatprep.subr.mxu0 0.0
    %132 = vmatpush1.msra.mxu0 %v108
    %133 = vmatprep.subr.mxu0 0.0
    %134 = vmatpush1.msra.mxu0 %v109
    %135 = vmatprep.subr.mxu0 0.0
    %136 = vmatpush1.msra.mxu0 %v110
    %137 = vmatprep.subr.mxu0 0.0
    %138 = vmatpush1.msra.mxu0 %v111
    %139 = vmatprep.subr.mxu0 0.0
    %140 = vmatpush1.msra.mxu0 %v112
    %141 = vmatprep.subr.mxu0 0.0
    %142 = vmatpush1.msra.mxu0 %v113
    %143 = vmatprep.subr.mxu0 0.0
    %144 = vmatpush1.msra.mxu0 %v114
    %145 = vmatprep.subr.mxu0 0.0
    %146 = vmatpush1.msra.mxu0 %v115
    %147 = vmatprep.subr.mxu0 0.0
    %148 = vmatpush1.msra.mxu0 %v116
    %149 = vmatprep.subr.mxu0 0.0
    %150 = vmatpush1.msra.mxu0 %v117
    %151 = vmatprep.subr.mxu0 0.0
    %152 = vmatpush1.msra.mxu0 %v118
    %153 = vmatprep.subr.mxu0 0.0
    %154 = vmatpush1.msra.mxu0 %v119
    %155 = vmatprep.subr.mxu0 0.0
    %156 = vmatpush1.msra.mxu0 %v120
    %157 = vmatprep.subr.mxu0 0.0
    %158 = vmatpush1.msra.mxu0 %v121
    %159 = vmatprep.subr.mxu0 0.0
    %160 = vmatpush1.msra.mxu0 %v122
    %161 = vmatprep.subr.mxu0 0.0
    %162 = vmatpush1.msra.mxu0 %v123
    %163 = vmatprep.subr.mxu0 0.0
    %164 = vmatpush1.msra.mxu0 0.0
    %165 = vmatprep.subr.mxu0 0.0
    %166 = vmatpush1.msra.mxu0 0.0
    %167 = vmatprep.subr.mxu0 0.0
    %168 = vmatpush1.msra.mxu0 0.0
    %169 = vmatprep.subr.mxu0 0.0
    %170 = vmatpush1.msra.mxu0 0.0
    %171 = vmatprep.subr.mxu0 0.0
    %172 = vmatpush1.msra.mxu0 0.0
    %173 = vmatprep.subr.mxu0 0.0
    %174 = vmatpush1.msra.mxu0 0.0
    %175 = vmatprep.subr.mxu0 0.0
    %176 = vmatpush1.msra.mxu0 0.0
    %177 = vmatprep.subr.mxu0 0.0
    %178 = vmatpush1.msra.mxu0 0.0
    %179 = vmatprep.subr.mxu0 0.0
    %180 = vmatpush1.msra.mxu0 0.0
    %181 = vmatprep.subr.mxu0 0.0
    %182 = vmatpush1.msra.mxu0 0.0
    %183 = vmatprep.subr.mxu0 0.0
    %184 = vmatpush1.msra.mxu0 0.0
    %185 = vmatprep.subr.mxu0 0.0
    %186 = vmatpush1.msra.mxu0 0.0
    %187 = vmatprep.subr.mxu0 0.0
    %188 = vmatpush1.msra.mxu0 0.0
    %189 = vmatprep.subr.mxu0 0.0
    %190 = vmatpush1.msra.mxu0 0.0
    %191 = vmatprep.subr.mxu0 0.0
    %192 = vmatpush1.msra.mxu0 0.0
    %193 = vmatprep.subr.mxu0 0.0
    %194 = vmatpush1.msra.mxu0 0.0
    %195 = vmatprep.mubr.f32.mxu0 0.0
    %196 = vmatmul.mubr.f32.gmra.mrb[0].mxu0 %v107
    %v197 = vpop.f32.mrb[0].mxu0
    %v198 = vadd.f32 %v129, %v197
    %v199 = vpop.f32.mrb[0].mxu0
    %200 = vdwg.mxu0
    %vm201 = vcmask 130048
    %202 = vst.msk [vmem:[#allocation2] sm:$0xff] %vm201, %v198
    // Predicated region
    $region22: #{tpu_custom_call.1} parent=1 // pred_check
      _
    $region23: #{tpu_custom_call.1} parent=1 // pred_check_branch
      %204 = sbr.rel (0) target = $region25
    $region24: #{tpu_custom_call.1} parent=1 // pred_region
      %s206 = ssub.s32 128, 128
      %207 = vsyncadd [#allocation3], %s206
      %s209 = sshll.u32 [#allocation2], 4
      %s210 = int_to_ptr.vmem [resolvable:$true] %s209
      %212 = dma.vmem_to_hbm [thread:$0]  %s210, 128, %s5, [#allocation3]
    $region25: #{tpu_custom_call.1} parent=1 // pred_fallthru
      _
    // Predicated region
    $region26: #{tpu_custom_call.1} parent=1 // pred_check
      _
    $region27: #{tpu_custom_call.1} parent=1 // pred_check_branch
      %214 = sbr.rel (0) target = $region29
    $region28: #{tpu_custom_call.1} parent=1 // pred_region
      %215 = dma.done [#allocation3], 128
    $region29: #{tpu_custom_call.1} parent=1 // pred_fallthru
      _
    %216 = vsyncpa [#allocation3], 1

</llo_original>
